<compile_context>
chip_gen: v6e
topology: v6e:2x2x1
jax: 0.10.0
libtpu: 0.0.40
codegen_flags: <defaults>
</compile_context>

<pallas_src>
import functools

import jax
import jax.numpy as jnp
from jax.experimental import pallas as pl
from jax.experimental.pallas import tpu as pltpu


def _round_up(x: int, m: int) -> int:
    return ((x + m - 1) // m) * m


def _classification_head_kernel(seed_ref, x_ref, wt_ref, b_ref, o_ref, *,
                                dropout_p: float, training: bool, tm: int):
    """One batch tile: o = dropout(x) @ W_t * scale + b (MXU matmul, f32 accumulation)."""
    x = x_ref[...]  # (tm, dim_size) f32

    apply_dropout = training and dropout_p > 0.0
    if apply_dropout:
        # Deterministic counter-based hash PRNG (portable: plain integer VPU ops).
        seed = seed_ref[0].astype(jnp.uint32)
        row0 = (pl.program_id(0) * tm).astype(jnp.uint32)          # global row offset of this tile
        rows = jax.lax.broadcasted_iota(jnp.uint32, x.shape, 0) + row0
        cols = jax.lax.broadcasted_iota(jnp.uint32, x.shape, 1)
        h = (rows * jnp.uint32(0x9E3779B1)) ^ (cols * jnp.uint32(0x85EBCA77)) ^ seed
        # murmur3 fmix32 finalizer
        h = h ^ (h >> jnp.uint32(16))
        h = h * jnp.uint32(0x7FEB352D)
        h = h ^ (h >> jnp.uint32(15))
        h = h * jnp.uint32(0x846CA68B)
        h = h ^ (h >> jnp.uint32(16))
        # Integer-domain keep mask: P(h >= thresh) == 1 - p  (no float conversion needed).
        thresh = jnp.uint32(min(int(round(dropout_p * (2 ** 32))), 2 ** 32 - 1))
        keep = h >= thresh
        x = jnp.where(keep, x, jnp.float32(0.0))

    out = jnp.dot(x, wt_ref[...], preferred_element_type=jnp.float32)   # (tm, num_classes)

    if apply_dropout:
        # Scalar commutes through the matmul: scale the small (tm, N) output, not the wide x.
        out = out * jnp.float32(1.0 / (1.0 - dropout_p))

    o_ref[...] = (out + b_ref[...]).astype(o_ref.dtype)


def classification_head_forward(x, weight, bias, *,
                                dropout_p: float = 0.02,
                                training: bool = False,
                                seed: int = 0):
    """Pallas forward for ClassificationHead.

    x:      (batch, dim_size)        float32
    weight: (num_classes, dim_size)  float32 (PyTorch nn.Linear layout)
    bias:   (num_classes,)           float32
    returns (batch, num_classes)     float32
    """
    batch, dim_size = x.shape
    num_classes = weight.shape[0]

    # --- tile size: biggest batch tile that keeps the double-buffered x stream small ---
    # ~8 MiB budget for 2 x (TM, dim_size) f32 buffers -> safe under v5e's 16 MiB default
    # scoped VMEM and well within v7x's 64 MiB physical VMEM.
    x_tile_budget_bytes = 8 * 1024 * 1024
    tm_cap = max(8, (x_tile_budget_bytes // (2 * dim_size * 4)) // 8 * 8)
    tm = min(_round_up(batch, 8), 1024, tm_cap)

    padded_batch = _round_up(batch, tm)
    if padded_batch != batch:
        x = jnp.pad(x, ((0, padded_batch - batch), (0, 0)))

    # Pre-transpose the weight once outside the kernel: (dim_size, num_classes).
    w_t = weight.T
    bias2d = bias.reshape(1, num_classes)
    seed_arr = jnp.array([seed], dtype=jnp.int32)

    kernel = functools.partial(_classification_head_kernel,
                               dropout_p=float(dropout_p),
                               training=bool(training),
                               tm=tm)

    grid = (pl.cdiv(padded_batch, tm),)

    grid_spec = pltpu.PrefetchScalarGridSpec(
        num_scalar_prefetch=1,           # seed lands in SMEM
        grid=grid,
        in_specs=[
            pl.BlockSpec((tm, dim_size), lambda i, seed: (i, 0)),          # x: streamed per tile
            pl.BlockSpec((dim_size, num_classes), lambda i, seed: (0, 0)),  # W^T: VMEM-resident
            pl.BlockSpec((1, num_classes), lambda i, seed: (0, 0)),         # bias: VMEM-resident
        ],
        out_specs=pl.BlockSpec((tm, num_classes), lambda i, seed: (i, 0)),
    )

    cost = pl.CostEstimate(
        flops=2 * padded_batch * dim_size * num_classes,
        transcendentals=0,
        bytes_accessed=(padded_batch * dim_size * 4
                        + dim_size * num_classes * 4
                        + num_classes * 4
                        + padded_batch * num_classes * 4),
    )

    out = pl.pallas_call(
        kernel,
        out_shape=jax.ShapeDtypeStruct((padded_batch, num_classes), jnp.float32),
        grid_spec=grid_spec,
        compiler_params=pltpu.CompilerParams(
            dimension_semantics=("parallel",),        # batch tiles shard across TCs on v7x
            vmem_limit_bytes=32 * 1024 * 1024,
        ),
        cost_estimate=cost,
    )(seed_arr, x, w_t, bias2d)

    if padded_batch != batch:
        out = out[:batch]
    return out


if __name__ == "__main__":
    # Small shapes consistent with the module: pooled embedding (batch, dim_size) -> (batch, num_classes)
    batch, dim_size, num_classes = 8, 32, 10

    key = jax.random.PRNGKey(0)
    kx, kw, kb = jax.random.split(key, 3)

    x = jax.random.normal(kx, (batch, dim_size), dtype=jnp.float32)

    # Deterministic nn.Linear-style init: U(-1/sqrt(dim_size), +1/sqrt(dim_size))
    bound = 1.0 / (dim_size ** 0.5)
    weight = jax.random.uniform(kw, (num_classes, dim_size),
                                minval=-bound, maxval=bound, dtype=jnp.float32)
    bias = jax.random.uniform(kb, (num_classes,),
                              minval=-bound, maxval=bound, dtype=jnp.float32)

    # Eval-mode forward (dropout == identity): deterministic, matches x @ W.T + b.
    out = classification_head_forward(x, weight, bias, dropout_p=0.02, training=False)
    out = jax.block_until_ready(out)

    ref = x @ weight.T + bias
    assert out.shape == (batch, num_classes)
    assert jnp.allclose(out, ref, atol=1e-5, rtol=1e-5)

    # Training-mode path (in-kernel hash dropout) — exercise it to ensure it lowers/runs.
    out_train = jax.block_until_ready(
        classification_head_forward(x, weight, bias, dropout_p=0.02, training=True, seed=123))
    assert out_train.shape == (batch, num_classes)
    assert bool(jnp.all(jnp.isfinite(out_train)))

    print("KERNEL_OK")
</pallas_src>

<mosaic_0001>
module attributes {stable_mosaic.version = 11 : i64} {
  func.func @_classification_head_kernel(%arg0: i32, %arg1: memref<1xi32, #tpu.memory_space<smem>>, %arg2: memref<8x32xf32, #tpu.memory_space<vmem>>, %arg3: memref<32x10xf32, #tpu.memory_space<vmem>>, %arg4: memref<1x10xf32, #tpu.memory_space<vmem>>, %arg5: memref<8x10xf32, #tpu.memory_space<vmem>>) attributes {dimension_semantics = [#tpu.dimension_semantics<parallel>], iteration_bounds = array<i64: 1>, scalar_prefetch = 1 : i64, scratch_operands = 0 : i64, tpu.core_type = #tpu.core_type<tc>, window_params = [{transform_indices = @transform_0, window_bounds = array<i64: 8, 32>}, {pipeline_mode = #tpu.pipeline_mode<synchronous>, transform_indices = @transform_1, window_bounds = array<i64: 32, 10>}, {pipeline_mode = #tpu.pipeline_mode<synchronous>, transform_indices = @transform_2, window_bounds = array<i64: 1, 10>}, {transform_indices = @transform_3, window_bounds = array<i64: 8, 10>}]} {
    %c0 = arith.constant 0 : index
    %c0_0 = arith.constant 0 : index
    %0 = vector.load %arg2[%c0, %c0_0] : memref<8x32xf32, #tpu.memory_space<vmem>>, vector<8x32xf32>
    %c0_1 = arith.constant 0 : index
    %c0_2 = arith.constant 0 : index
    %1 = vector.load %arg3[%c0_1, %c0_2] : memref<32x10xf32, #tpu.memory_space<vmem>>, vector<32x10xf32>
    %cst = arith.constant dense<0.000000e+00> : vector<8x10xf32>
    %2 = tpu.matmul %0, %1, %cst {dimension_numbers = #tpu.dot_dimension_numbers<[1], [0], [0], [1], [0, 0, 1, 1], [], []>} : vector<8x32xf32>, vector<32x10xf32>, vector<8x10xf32> -> vector<8x10xf32>
    %c0_3 = arith.constant 0 : index
    %c0_4 = arith.constant 0 : index
    %3 = vector.load %arg4[%c0_3, %c0_4] : memref<1x10xf32, #tpu.memory_space<vmem>>, vector<1x10xf32>
    %4 = vector.broadcast %3 : vector<1x10xf32> to vector<8x10xf32>
    %5 = arith.addf %2, %4 : vector<8x10xf32>
    %c0_5 = arith.constant 0 : index
    %c0_6 = arith.constant 0 : index
    %6 = vector.load %arg5[%c0_5, %c0_6] : memref<8x10xf32, #tpu.memory_space<vmem>>, vector<8x10xf32>
    tpu.vector_store %arg5[%c0_5, %c0_6], %5 {strides = array<i32>} : memref<8x10xf32, #tpu.memory_space<vmem>>, vector<8x10xf32>,
    return
  }
  func.func @transform_0(%arg0: i32, %arg1: memref<1xi32, #tpu.memory_space<smem>>) -> (i32, i32) {
    %c0_i32 = arith.constant 0 : i32
    %c0_i32_0 = arith.constant 0 : i32
    return %arg0, %c0_i32 : i32, i32
  }
  func.func @transform_1(%arg0: i32, %arg1: memref<1xi32, #tpu.memory_space<smem>>) -> (i32, i32) {
    %c0_i32 = arith.constant 0 : i32
    %c0_i32_0 = arith.constant 0 : i32
    %c0_i32_1 = arith.constant 0 : i32
    return %c0_i32, %c0_i32_0 : i32, i32
  }
  func.func @transform_2(%arg0: i32, %arg1: memref<1xi32, #tpu.memory_space<smem>>) -> (i32, i32) {
    %c0_i32 = arith.constant 0 : i32
    %c0_i32_0 = arith.constant 0 : i32
    %c0_i32_1 = arith.constant 0 : i32
    return %c0_i32, %c0_i32_0 : i32, i32
  }
  func.func @transform_3(%arg0: i32, %arg1: memref<1xi32, #tpu.memory_space<smem>>) -> (i32, i32) {
    %c0_i32 = arith.constant 0 : i32
    %c0_i32_0 = arith.constant 0 : i32
    return %arg0, %c0_i32 : i32, i32
  }
}

</mosaic_0001>

<llo_original>
// kernel: tpu_custom_call.1
$region0: #{tpu_custom_call.1}
  #allocation0 [shape = 'u32[]', space=smem, size = 0x4, offset = 0x4, fixed_abs, tag = 'smem constant byte address 0x4 - core index']
  #allocation1 [shape = 'u32[144,128]{1,0:T(1,128)}', space=vmem, size = 0x12000, scoped, tag = 'internal scratch']
  #allocation2 [shape = 's32[1]{0}', space=sflag, size = 0x4, scoped, tag = 'scoped memory for tpu_custom_call.1']
  #allocation3 [shape = 's32[1]{0:T(128)S(6)}', space=smem, size = 0x200, scoped, tag = 'prefetched SMEM operand 0']
  %s0 = inlined_call_operand.<no memory space> [shape: s32[1], index: 0, kind: input, shape index: {}]
  %s1 = inlined_call_operand.vmem [shape: f32[8,32], index: 1, kind: input, shape index: {}]
  %s2 = inlined_call_operand.vmem [shape: f32[32,10], index: 2, kind: input, shape index: {}]
  %s3 = inlined_call_operand.vmem [shape: f32[1,10], index: 3, kind: input, shape index: {}]
  %s4 = inlined_call_operand.hbm [shape: f32[8,10], index: 4, kind: output, shape index: {}]
  %s5 = sld [smem:[#allocation0]]
  $region22: #{tpu_custom_call.1} parent=0
    _
  %s7 = ssub.s32 1, %s5
  %s8 = scalar_select 0, %s7, %s5
  %9 = sst [smem:[#allocation3]] %s0
  $region1: #{tpu_custom_call.1} parent=0
    #allocation4 [shape = 'u8[4096]{0}', space=vmem, size = 0x1000, scoped, tag = 'output window, operand 0, single buffered']
    #allocation5 [shape = 's32[1]{0}', space=sflag, size = 0x4, scoped, tag = 'scoped memory for tpu_custom_call.1']
    %10 = vsyncpa [#allocation5], 0
    // Predicated region
    $region2: #{tpu_custom_call.1} parent=1 // pred_check
      _
    $region3: #{tpu_custom_call.1} parent=1 // pred_check_branch
      %12 = sbr.rel (0) target = $region5
    $region4: #{tpu_custom_call.1} parent=1 // pred_region
      _
    $region5: #{tpu_custom_call.1} parent=1 // pred_fallthru
      _
    // Predicated region
    $region6: #{tpu_custom_call.1} parent=1 // pred_check
      _
    $region7: #{tpu_custom_call.1} parent=1 // pred_check_branch
      %14 = sbr.rel (0) target = $region9
    $region8: #{tpu_custom_call.1} parent=1 // pred_region
      _
    $region9: #{tpu_custom_call.1} parent=1 // pred_fallthru
      _
    // Predicated region
    $region10: #{tpu_custom_call.1} parent=1 // pred_check
      _
    $region11: #{tpu_custom_call.1} parent=1 // pred_check_branch
      %16 = sbr.rel (0) target = $region13
    $region12: #{tpu_custom_call.1} parent=1 // pred_region
      _
    $region13: #{tpu_custom_call.1} parent=1 // pred_fallthru
      _
    %v17 = vld [vmem:[%s1] sm:$0xff]
    %v18 = vld [vmem:[%s2] sm:$0xff]
    %v19 = vld [vmem:[%s2 + $0x8] sm:$0xff]
    %v20 = vld [vmem:[%s2 + $0x10] sm:$0xff]
    %v21 = vld [vmem:[%s2 + $0x18] sm:$0xff]
    %v22 = vld [vmem:[%s3] sm:$0x1]
    %v24 = vlaneseq
    %v25 = vshrl.u32 %v24, 7
    %v26 = vsub.s32 0, %v25
    %v27 = vrot.slane %v22, %v26
    %vm29 = vcmask 261120
    %v31 = vsel %vm29, %v17, 0
    %33 = vmatprep.subr.mxu0 0.0
    %34 = vmatpush1.msra.mxu0 0.0
    %35 = vmatprep.subr.mxu0 0.0
    %36 = vmatpush1.msra.mxu0 0.0
    %37 = vmatprep.subr.mxu0 0.0
    %38 = vmatpush1.msra.mxu0 0.0
    %39 = vmatprep.subr.mxu0 0.0
    %40 = vmatpush1.msra.mxu0 0.0
    %41 = vmatprep.subr.mxu0 0.0
    %42 = vmatpush1.msra.mxu0 0.0
    %43 = vmatprep.subr.mxu0 0.0
    %44 = vmatpush1.msra.mxu0 0.0
    %45 = vmatprep.subr.mxu0 0.0
    %46 = vmatpush1.msra.mxu0 0.0
    %47 = vmatprep.subr.mxu0 0.0
    %48 = vmatpush1.msra.mxu0 0.0
    %49 = vmatprep.subr.mxu0 0.0
    %50 = vmatpush1.msra.mxu0 0.0
    %51 = vmatprep.subr.mxu0 0.0
    %52 = vmatpush1.msra.mxu0 0.0
    %53 = vmatprep.subr.mxu0 0.0
    %54 = vmatpush1.msra.mxu0 0.0
    %55 = vmatprep.subr.mxu0 0.0
    %56 = vmatpush1.msra.mxu0 0.0
    %57 = vmatprep.subr.mxu0 0.0
    %58 = vmatpush1.msra.mxu0 %v21
    %59 = vmatprep.subr.mxu0 0.0
    %60 = vmatpush1.msra.mxu0 %v20
    %61 = vmatprep.subr.mxu0 0.0
    %62 = vmatpush1.msra.mxu0 %v19
    %63 = vmatprep.subr.mxu0 0.0
    %64 = vmatpush1.msra.mxu0 %v18
    %65 = vmatprep.subr.mxu0 0.0
    %66 = vmatpush2.msra.mxu0 0.0
    %67 = vmatprep.subr.mxu0 0.0
    %68 = vmatpush2.msra.mxu0 0.0
    %69 = vmatprep.subr.mxu0 0.0
    %70 = vmatpush2.msra.mxu0 0.0
    %71 = vmatprep.subr.mxu0 0.0
    %72 = vmatpush2.msra.mxu0 0.0
    %73 = vmatprep.subr.mxu0 0.0
    %74 = vmatpush2.msra.mxu0 0.0
    %75 = vmatprep.subr.mxu0 0.0
    %76 = vmatpush2.msra.mxu0 0.0
    %77 = vmatprep.subr.mxu0 0.0
    %78 = vmatpush2.msra.mxu0 0.0
    %79 = vmatprep.subr.mxu0 0.0
    %80 = vmatpush2.msra.mxu0 0.0
    %81 = vmatprep.subr.mxu0 0.0
    %82 = vmatpush2.msra.mxu0 0.0
    %83 = vmatprep.subr.mxu0 0.0
    %84 = vmatpush2.msra.mxu0 0.0
    %85 = vmatprep.subr.mxu0 0.0
    %86 = vmatpush2.msra.mxu0 0.0
    %87 = vmatprep.subr.mxu0 0.0
    %88 = vmatpush2.msra.mxu0 0.0
    %89 = vmatprep.subr.mxu0 0.0
    %90 = vmatpush2.msra.mxu0 0.0
    %91 = vmatprep.subr.mxu0 0.0
    %92 = vmatpush2.msra.mxu0 0.0
    %93 = vmatprep.subr.mxu0 0.0
    %94 = vmatpush2.msra.mxu0 0.0
    %95 = vmatprep.subr.mxu0 0.0
    %96 = vmatpush2.msra.mxu0 0.0
    %97 = vmatprep.mubr.f32.mxu0 0.0
    %98 = vmatmul.mubr.f32.gmra.mxu0 %v31
    %v99 = vpop.f32.mrf.mxu0
    %v100 = vadd.f32 %v27, %v99
    %v101 = vpop.f32.mrf.mxu0
    %102 = vdwg.mxu0
    %vm103 = vcmask 80896
    %104 = vst.msk [vmem:[#allocation4] sm:$0xff] %vm103, %v100
    // Predicated region
    $region14: #{tpu_custom_call.1} parent=1 // pred_check
      _
    $region15: #{tpu_custom_call.1} parent=1 // pred_check_branch
      %106 = sbr.rel (0) target = $region17
    $region16: #{tpu_custom_call.1} parent=1 // pred_region
      %s108 = ssub.s32 128, 128
      %109 = vsyncadd [#allocation5], %s108
      %s111 = sshll.u32 [#allocation4], 4
      %s112 = int_to_ptr.vmem [resolvable:$true] %s111
      %114 = dma.vmem_to_hbm [thread:$0]  %s112, 128, %s4, [#allocation5]
    $region17: #{tpu_custom_call.1} parent=1 // pred_fallthru
      _
    // Predicated region
    $region18: #{tpu_custom_call.1} parent=1 // pred_check
      _
    $region19: #{tpu_custom_call.1} parent=1 // pred_check_branch
      %116 = sbr.rel (0) target = $region21
    $region20: #{tpu_custom_call.1} parent=1 // pred_region
      %117 = dma.done [#allocation5], 128
    $region21: #{tpu_custom_call.1} parent=1 // pred_fallthru
      _
    %118 = vsyncpa [#allocation5], 1

</llo_original>
